<compile_context>
chip_gen: v7x
topology: tpu7x:2x2x1
jax: 0.10.0
libtpu: 0.0.40
codegen_flags: <defaults>
</compile_context>

<pallas_src>
import functools

import jax
import jax.numpy as jnp
from jax.experimental import pallas as pl
from jax.experimental.pallas import tpu as pltpu

MIN_TILE = 16  # sublane multiple for bf16-packed activations


def _leaky_relu(v, negative_slope=0.01):
    return jnp.where(v >= 0, v, negative_slope * v)


def _softplus(z):
    # Numerically stable softplus (beta=1): max(z,0) + log1p(exp(-|z|))
    return jnp.maximum(z, 0.0) + jnp.log1p(jnp.exp(-jnp.abs(z)))


def _round_up(n, m):
    return ((n + m - 1) // m) * m


def earthquake_kernel(
    x_ref,
    w1_ref, c1_ref,
    w2_ref, c2_ref,
    w3_ref, c3_ref,
    wc_ref, bc_ref,
    wr_ref, br_ref,
    class_ref, reg_ref,
):
    bf = jnp.bfloat16
    x = x_ref[...].astype(bf)

    # Block 1: (BN-folded) Linear(input_dim, 64) -> LeakyReLU  [Dropout: id]
    h = _leaky_relu(
        jnp.dot(x, w1_ref[...], preferred_element_type=jnp.float32) + c1_ref[...]
    )
    # Block 2: Linear(64, 128) -> LeakyReLU
    h = _leaky_relu(
        jnp.dot(h.astype(bf), w2_ref[...], preferred_element_type=jnp.float32)
        + c2_ref[...]
    )
    # Block 3: Linear(128, 64) -> LeakyReLU
    h = _leaky_relu(
        jnp.dot(h.astype(bf), w3_ref[...], preferred_element_type=jnp.float32)
        + c3_ref[...]
    )
    hb = h.astype(bf)

    # Classification head: Linear(64, num_classes)
    class_ref[...] = (
        jnp.dot(hb, wc_ref[...], preferred_element_type=jnp.float32) + bc_ref[...]
    )
    # Regression head: Linear(64, 2) -> Softplus (EUP work on 2 lanes only)
    reg_ref[...] = _softplus(
        jnp.dot(hb, wr_ref[...], preferred_element_type=jnp.float32) + br_ref[...]
    )


@functools.partial(jax.jit, static_argnames=("num_classes", "tile_n"))
def earthquake_forward(x, params, num_classes=5, tile_n=2048):
    """x: (N, input_dim) float.  params: BN-folded, bf16 weights (see fold_params)."""
    N, F = x.shape
    head_w = num_classes + 2

    # Tile sizing: multiple of 16 (bf16 sublane packing); cap at ~N/4 so the
    # grid keeps >=4 steps (both v7x TensorCores stay busy on the parallel
    # batch axis); no host-side padding -- Pallas masks the ragged last tile.
    tile = min(tile_n, _round_up(pl.cdiv(N, 4), MIN_TILE))
    tile = max(_round_up(tile, MIN_TILE), MIN_TILE)
    grid = (pl.cdiv(N, tile),)

    operands = (
        x,
        params["w1"], params["c1"],
        params["w2"], params["c2"],
        params["w3"], params["c3"],
        params["wc"], params["bc"],
        params["wr"], params["br"],
    )

    def const_spec(shape):
        # Whole small operand, VMEM-resident across all grid steps.
        return pl.BlockSpec(shape, lambda i: (0, 0))

    in_specs = [pl.BlockSpec((tile, F), lambda i: (i, 0))]
    in_specs += [const_spec(op.shape) for op in operands[1:]]

    out_specs = (
        pl.BlockSpec((tile, num_classes), lambda i: (i, 0)),
        pl.BlockSpec((tile, 2), lambda i: (i, 0)),
    )
    out_shape = (
        jax.ShapeDtypeStruct((N, num_classes), jnp.float32),
        jax.ShapeDtypeStruct((N, 2), jnp.float32),
    )

    macs = F * 64 + 64 * 128 + 128 * 64 + 64 * head_w
    weight_bytes = 2 * macs + 4 * (64 + 128 + 64 + head_w)  # bf16 W, f32 b
    cost = pl.CostEstimate(
        flops=2 * N * macs,
        transcendentals=2 * N * 2,  # exp + log1p on the 2 regression lanes
        bytes_accessed=N * 4 * (F + head_w) + weight_bytes,
    )

    class_out, reg_out = pl.pallas_call(
        earthquake_kernel,
        out_shape=out_shape,
        grid=grid,
        in_specs=in_specs,
        out_specs=out_specs,
        compiler_params=pltpu.CompilerParams(
            dimension_semantics=("parallel",),
            vmem_limit_bytes=32 << 20,  # guardrail for v7x's 64 MiB physical VMEM
        ),
        cost_estimate=cost,
    )(*operands)
    return class_out, reg_out


# ----------------------------------------------------------------------------
# Parameter construction (PyTorch-equivalent init) + host-side folding.
# ----------------------------------------------------------------------------

def _init_linear(key, fan_in, fan_out):
    # nn.Linear default init: U(-1/sqrt(fan_in), 1/sqrt(fan_in)); stored (in, out).
    kw, kb = jax.random.split(key)
    bound = 1.0 / jnp.sqrt(float(fan_in))
    w = jax.random.uniform(kw, (fan_in, fan_out), jnp.float32, -bound, bound)
    b = jax.random.uniform(kb, (1, fan_out), jnp.float32, -bound, bound)
    return w, b


def _init_bn(key, features, eps=1e-5):
    # Non-trivial BatchNorm1d eval-mode params as per-feature scale/shift.
    kg, kb, km, kv = jax.random.split(key, 4)
    gamma = 1.0 + 0.1 * jax.random.normal(kg, (1, features), jnp.float32)
    beta = 0.1 * jax.random.normal(kb, (1, features), jnp.float32)
    running_mean = 0.1 * jax.random.normal(km, (1, features), jnp.float32)
    running_var = 0.5 + jnp.abs(jax.random.normal(kv, (1, features), jnp.float32))
    scale = gamma / jnp.sqrt(running_var + eps)
    shift = beta - running_mean * scale
    return scale, shift


def init_params(key, input_dim, num_classes=5):
    keys = jax.random.split(key, 8)
    w1, b1 = _init_linear(keys[0], input_dim, 64)
    s1, t1 = _init_bn(keys[1], 64)
    w2, b2 = _init_linear(keys[2], 64, 128)
    s2, t2 = _init_bn(keys[3], 128)
    w3, b3 = _init_linear(keys[4], 128, 64)
    s3, t3 = _init_bn(keys[5], 64)
    wc, bc = _init_linear(keys[6], 64, num_classes)
    wr, br = _init_linear(keys[7], 64, 2)
    return dict(
        w1=w1, b1=b1, s1=s1, t1=t1,
        w2=w2, b2=b2, s2=s2, t2=t2,
        w3=w3, b3=b3, s3=s3, t3=t3,
        wc=wc, bc=bc, wr=wr, br=br,
    )


def fold_params(p):
    """Fold BN into the linears; store matmul weights in bf16, biases in f32."""
    bf = jnp.bfloat16
    # Linear + BN(eval):  (x @ W + b) * s + t  ==  x @ (W*s) + (b*s + t)
    return dict(
        w1=(p["w1"] * p["s1"]).astype(bf),
        c1=(p["b1"] * p["s1"] + p["t1"]).astype(jnp.float32),
        w2=(p["w2"] * p["s2"]).astype(bf),
        c2=(p["b2"] * p["s2"] + p["t2"]).astype(jnp.float32),
        w3=(p["w3"] * p["s3"]).astype(bf),
        c3=(p["b3"] * p["s3"] + p["t3"]).astype(jnp.float32),
        wc=p["wc"].astype(bf), bc=p["bc"].astype(jnp.float32),
        wr=p["wr"].astype(bf), br=p["br"].astype(jnp.float32),
    )


def reference_forward(x, p):
    # Pure-JAX f32 reference on the UN-folded params (eval-mode torch semantics).
    h = _leaky_relu((x @ p["w1"] + p["b1"]) * p["s1"] + p["t1"])
    h = _leaky_relu((h @ p["w2"] + p["b2"]) * p["s2"] + p["t2"])
    h = _leaky_relu((h @ p["w3"] + p["b3"]) * p["s3"] + p["t3"])
    class_out = h @ p["wc"] + p["bc"]
    reg_out = _softplus(h @ p["wr"] + p["br"])
    return class_out, reg_out


def reference_forward_folded(x, fp):
    # Pure-JAX reference mirroring the kernel's bf16-input / f32-accumulate math.
    bf = jnp.bfloat16
    h = _leaky_relu(
        jnp.dot(x.astype(bf), fp["w1"], preferred_element_type=jnp.float32) + fp["c1"])
    h = _leaky_relu(
        jnp.dot(h.astype(bf), fp["w2"], preferred_element_type=jnp.float32) + fp["c2"])
    h = _leaky_relu(
        jnp.dot(h.astype(bf), fp["w3"], preferred_element_type=jnp.float32) + fp["c3"])
    hb = h.astype(bf)
    c = jnp.dot(hb, fp["wc"], preferred_element_type=jnp.float32) + fp["bc"]
    r = _softplus(jnp.dot(hb, fp["wr"], preferred_element_type=jnp.float32) + fp["br"])
    return c, r


if __name__ == "__main__":
    # TODO(synk): Dropout(0.3) and train-mode (batch-stat) BatchNorm are not
    # reproduced; eval-mode forward semantics are implemented.
    key = jax.random.PRNGKey(0)
    k_x, k_p = jax.random.split(key)

    batch = 64
    input_dim = 16
    num_classes = 5

    x = jax.random.normal(k_x, (batch, input_dim), jnp.float32)
    raw_params = init_params(k_p, input_dim, num_classes)
    params = fold_params(raw_params)

    # Default tile sizing caps at ~N/4 -> grid of 4 batch tiles here.
    class_out, reg_out = earthquake_forward(x, params, num_classes=num_classes)
    jax.block_until_ready((class_out, reg_out))

    ref_class_f32, ref_reg_f32 = reference_forward(x, raw_params)
    ref_class_bf, ref_reg_bf = reference_forward_folded(x, params)

    assert class_out.shape == (batch, num_classes)
    assert reg_out.shape == (batch, 2)
    # Tight match against the bf16-input / f32-accumulate reference.
    assert jnp.allclose(class_out, ref_class_bf, atol=2e-3, rtol=2e-3)
    assert jnp.allclose(reg_out, ref_reg_bf, atol=2e-3, rtol=2e-3)
    # Loose match against the pure-f32 torch-semantics reference.
    assert jnp.allclose(class_out, ref_class_f32, atol=6e-2, rtol=6e-2)
    assert jnp.allclose(reg_out, ref_reg_f32, atol=6e-2, rtol=6e-2)
    assert bool(jnp.all(reg_out >= 0.0))  # softplus output constraint

    # Batch that is not a multiple of the tile (ragged last tile, no host pad).
    x_odd = x[:37]
    c_odd, r_odd = earthquake_forward(x_odd, params, num_classes=num_classes)
    jax.block_until_ready((c_odd, r_odd))
    assert c_odd.shape == (37, num_classes) and r_odd.shape == (37, 2)
    assert jnp.allclose(c_odd, ref_class_bf[:37], atol=2e-3, rtol=2e-3)
    assert jnp.allclose(r_odd, ref_reg_bf[:37], atol=2e-3, rtol=2e-3)

    print("KERNEL_OK")
</pallas_src>

<mosaic_0001>
module attributes {stable_mosaic.version = 11 : i64} {
  func.func @earthquake_kernel(%arg0: i32, %arg1: memref<16x16xf32, #tpu.memory_space<vmem>>, %arg2: memref<16x64xbf16, #tpu.memory_space<vmem>>, %arg3: memref<1x64xf32, #tpu.memory_space<vmem>>, %arg4: memref<64x128xbf16, #tpu.memory_space<vmem>>, %arg5: memref<1x128xf32, #tpu.memory_space<vmem>>, %arg6: memref<128x64xbf16, #tpu.memory_space<vmem>>, %arg7: memref<1x64xf32, #tpu.memory_space<vmem>>, %arg8: memref<64x5xbf16, #tpu.memory_space<vmem>>, %arg9: memref<1x5xf32, #tpu.memory_space<vmem>>, %arg10: memref<64x2xbf16, #tpu.memory_space<vmem>>, %arg11: memref<1x2xf32, #tpu.memory_space<vmem>>, %arg12: memref<16x5xf32, #tpu.memory_space<vmem>>, %arg13: memref<16x2xf32, #tpu.memory_space<vmem>>) attributes {dimension_semantics = [#tpu.dimension_semantics<parallel>], iteration_bounds = array<i64: 4>, scalar_prefetch = 0 : i64, scratch_operands = 0 : i64, tpu.core_type = #tpu.core_type<tc>, window_params = [{transform_indices = @transform_0, window_bounds = array<i64: 16, 16>}, {pipeline_mode = #tpu.pipeline_mode<synchronous>, transform_indices = @transform_1, window_bounds = array<i64: 16, 64>}, {pipeline_mode = #tpu.pipeline_mode<synchronous>, transform_indices = @transform_2, window_bounds = array<i64: 1, 64>}, {pipeline_mode = #tpu.pipeline_mode<synchronous>, transform_indices = @transform_3, window_bounds = array<i64: 64, 128>}, {pipeline_mode = #tpu.pipeline_mode<synchronous>, transform_indices = @transform_4, window_bounds = array<i64: 1, 128>}, {pipeline_mode = #tpu.pipeline_mode<synchronous>, transform_indices = @transform_5, window_bounds = array<i64: 128, 64>}, {pipeline_mode = #tpu.pipeline_mode<synchronous>, transform_indices = @transform_6, window_bounds = array<i64: 1, 64>}, {pipeline_mode = #tpu.pipeline_mode<synchronous>, transform_indices = @transform_7, window_bounds = array<i64: 64, 5>}, {pipeline_mode = #tpu.pipeline_mode<synchronous>, transform_indices = @transform_8, window_bounds = array<i64: 1, 5>}, {pipeline_mode = #tpu.pipeline_mode<synchronous>, transform_indices = @transform_9, window_bounds = array<i64: 64, 2>}, {pipeline_mode = #tpu.pipeline_mode<synchronous>, transform_indices = @transform_10, window_bounds = array<i64: 1, 2>}, {transform_indices = @transform_11, window_bounds = array<i64: 16, 5>}, {transform_indices = @transform_12, window_bounds = array<i64: 16, 2>}]} {
    %c0 = arith.constant 0 : index
    %c0_0 = arith.constant 0 : index
    %0 = vector.load %arg1[%c0, %c0_0] : memref<16x16xf32, #tpu.memory_space<vmem>>, vector<16x16xf32>
    %1 = arith.truncf %0 : vector<16x16xf32> to vector<16x16xbf16>
    %c0_1 = arith.constant 0 : index
    %c0_2 = arith.constant 0 : index
    %2 = vector.load %arg2[%c0_1, %c0_2] : memref<16x64xbf16, #tpu.memory_space<vmem>>, vector<16x64xbf16>
    %cst = arith.constant dense<0.000000e+00> : vector<16x64xf32>
    %3 = tpu.matmul %1, %2, %cst {dimension_numbers = #tpu.dot_dimension_numbers<[1], [0], [0], [1], [0, 0, 1, 1], [], []>} : vector<16x16xbf16>, vector<16x64xbf16>, vector<16x64xf32> -> vector<16x64xf32>
    %c0_3 = arith.constant 0 : index
    %c0_4 = arith.constant 0 : index
    %4 = vector.load %arg3[%c0_3, %c0_4] : memref<1x64xf32, #tpu.memory_space<vmem>>, vector<1x64xf32>
    %5 = vector.broadcast %4 : vector<1x64xf32> to vector<16x64xf32>
    %6 = arith.addf %3, %5 : vector<16x64xf32>
    %cst_5 = arith.constant 0.000000e+00 : f32
    %7 = vector.broadcast %cst_5 : f32 to vector<16x64xf32>
    %8 = arith.cmpf oge, %6, %7 : vector<16x64xf32>
    %cst_6 = arith.constant 0.00999999977 : f32
    %9 = vector.broadcast %cst_6 : f32 to vector<16x64xf32>
    %10 = arith.mulf %9, %6 : vector<16x64xf32>
    %11 = arith.select %8, %6, %10 : vector<16x64xi1>, vector<16x64xf32>
    %12 = arith.truncf %11 : vector<16x64xf32> to vector<16x64xbf16>
    %c0_7 = arith.constant 0 : index
    %c0_8 = arith.constant 0 : index
    %13 = vector.load %arg4[%c0_7, %c0_8] : memref<64x128xbf16, #tpu.memory_space<vmem>>, vector<64x128xbf16>
    %cst_9 = arith.constant dense<0.000000e+00> : vector<16x128xf32>
    %14 = tpu.matmul %12, %13, %cst_9 {dimension_numbers = #tpu.dot_dimension_numbers<[1], [0], [0], [1], [0, 0, 1, 1], [], []>} : vector<16x64xbf16>, vector<64x128xbf16>, vector<16x128xf32> -> vector<16x128xf32>
    %c0_10 = arith.constant 0 : index
    %c0_11 = arith.constant 0 : index
    %15 = vector.load %arg5[%c0_10, %c0_11] : memref<1x128xf32, #tpu.memory_space<vmem>>, vector<1x128xf32>
    %16 = vector.broadcast %15 : vector<1x128xf32> to vector<16x128xf32>
    %17 = arith.addf %14, %16 : vector<16x128xf32>
    %cst_12 = arith.constant 0.000000e+00 : f32
    %18 = vector.broadcast %cst_12 : f32 to vector<16x128xf32>
    %19 = arith.cmpf oge, %17, %18 : vector<16x128xf32>
    %cst_13 = arith.constant 0.00999999977 : f32
    %20 = vector.broadcast %cst_13 : f32 to vector<16x128xf32>
    %21 = arith.mulf %20, %17 : vector<16x128xf32>
    %22 = arith.select %19, %17, %21 : vector<16x128xi1>, vector<16x128xf32>
    %23 = arith.truncf %22 : vector<16x128xf32> to vector<16x128xbf16>
    %c0_14 = arith.constant 0 : index
    %c0_15 = arith.constant 0 : index
    %24 = vector.load %arg6[%c0_14, %c0_15] : memref<128x64xbf16, #tpu.memory_space<vmem>>, vector<128x64xbf16>
    %cst_16 = arith.constant dense<0.000000e+00> : vector<16x64xf32>
    %25 = tpu.matmul %23, %24, %cst_16 {dimension_numbers = #tpu.dot_dimension_numbers<[1], [0], [0], [1], [0, 0, 1, 1], [], []>} : vector<16x128xbf16>, vector<128x64xbf16>, vector<16x64xf32> -> vector<16x64xf32>
    %c0_17 = arith.constant 0 : index
    %c0_18 = arith.constant 0 : index
    %26 = vector.load %arg7[%c0_17, %c0_18] : memref<1x64xf32, #tpu.memory_space<vmem>>, vector<1x64xf32>
    %27 = vector.broadcast %26 : vector<1x64xf32> to vector<16x64xf32>
    %28 = arith.addf %25, %27 : vector<16x64xf32>
    %cst_19 = arith.constant 0.000000e+00 : f32
    %29 = vector.broadcast %cst_19 : f32 to vector<16x64xf32>
    %30 = arith.cmpf oge, %28, %29 : vector<16x64xf32>
    %cst_20 = arith.constant 0.00999999977 : f32
    %31 = vector.broadcast %cst_20 : f32 to vector<16x64xf32>
    %32 = arith.mulf %31, %28 : vector<16x64xf32>
    %33 = arith.select %30, %28, %32 : vector<16x64xi1>, vector<16x64xf32>
    %34 = arith.truncf %33 : vector<16x64xf32> to vector<16x64xbf16>
    %c0_21 = arith.constant 0 : index
    %c0_22 = arith.constant 0 : index
    %35 = vector.load %arg8[%c0_21, %c0_22] : memref<64x5xbf16, #tpu.memory_space<vmem>>, vector<64x5xbf16>
    %cst_23 = arith.constant dense<0.000000e+00> : vector<16x5xf32>
    %36 = tpu.matmul %34, %35, %cst_23 {dimension_numbers = #tpu.dot_dimension_numbers<[1], [0], [0], [1], [0, 0, 1, 1], [], []>} : vector<16x64xbf16>, vector<64x5xbf16>, vector<16x5xf32> -> vector<16x5xf32>
    %c0_24 = arith.constant 0 : index
    %c0_25 = arith.constant 0 : index
    %37 = vector.load %arg9[%c0_24, %c0_25] : memref<1x5xf32, #tpu.memory_space<vmem>>, vector<1x5xf32>
    %38 = vector.broadcast %37 : vector<1x5xf32> to vector<16x5xf32>
    %39 = arith.addf %36, %38 : vector<16x5xf32>
    %c0_26 = arith.constant 0 : index
    %c0_27 = arith.constant 0 : index
    %40 = vector.load %arg12[%c0_26, %c0_27] : memref<16x5xf32, #tpu.memory_space<vmem>>, vector<16x5xf32>
    tpu.vector_store %arg12[%c0_26, %c0_27], %39 {strides = array<i32>} : memref<16x5xf32, #tpu.memory_space<vmem>>, vector<16x5xf32>,
    %c0_28 = arith.constant 0 : index
    %c0_29 = arith.constant 0 : index
    %41 = vector.load %arg10[%c0_28, %c0_29] : memref<64x2xbf16, #tpu.memory_space<vmem>>, vector<64x2xbf16>
    %cst_30 = arith.constant dense<0.000000e+00> : vector<16x2xf32>
    %42 = tpu.matmul %34, %41, %cst_30 {dimension_numbers = #tpu.dot_dimension_numbers<[1], [0], [0], [1], [0, 0, 1, 1], [], []>} : vector<16x64xbf16>, vector<64x2xbf16>, vector<16x2xf32> -> vector<16x2xf32>
    %c0_31 = arith.constant 0 : index
    %c0_32 = arith.constant 0 : index
    %43 = vector.load %arg11[%c0_31, %c0_32] : memref<1x2xf32, #tpu.memory_space<vmem>>, vector<1x2xf32>
    %44 = vector.broadcast %43 : vector<1x2xf32> to vector<16x2xf32>
    %45 = arith.addf %42, %44 : vector<16x2xf32>
    %cst_33 = arith.constant 0.000000e+00 : f32
    %46 = vector.broadcast %cst_33 : f32 to vector<16x2xf32>
    %47 = arith.maximumf %45, %46 : vector<16x2xf32>
    %48 = math.absf %45 : vector<16x2xf32>
    %cst_34 = arith.constant 0.000000e+00 : f32
    %49 = vector.broadcast %cst_34 : f32 to vector<16x2xf32>
    %50 = arith.subf %49, %48 : vector<16x2xf32>
    %51 = math.exp %50 : vector<16x2xf32>
    %52 = math.log1p %51 : vector<16x2xf32>
    %53 = arith.addf %47, %52 : vector<16x2xf32>
    %c0_35 = arith.constant 0 : index
    %c0_36 = arith.constant 0 : index
    %54 = vector.load %arg13[%c0_35, %c0_36] : memref<16x2xf32, #tpu.memory_space<vmem>>, vector<16x2xf32>
    tpu.vector_store %arg13[%c0_35, %c0_36], %53 {strides = array<i32>} : memref<16x2xf32, #tpu.memory_space<vmem>>, vector<16x2xf32>,
    return
  }
  func.func @transform_0(%arg0: i32) -> (i32, i32) {
    %c0_i32 = arith.constant 0 : i32
    %c0_i32_0 = arith.constant 0 : i32
    return %arg0, %c0_i32 : i32, i32
  }
  func.func @transform_1(%arg0: i32) -> (i32, i32) {
    %c0_i32 = arith.constant 0 : i32
    %c0_i32_0 = arith.constant 0 : i32
    %c0_i32_1 = arith.constant 0 : i32
    return %c0_i32, %c0_i32_0 : i32, i32
  }
  func.func @transform_2(%arg0: i32) -> (i32, i32) {
    %c0_i32 = arith.constant 0 : i32
    %c0_i32_0 = arith.constant 0 : i32
    %c0_i32_1 = arith.constant 0 : i32
    return %c0_i32, %c0_i32_0 : i32, i32
  }
  func.func @transform_3(%arg0: i32) -> (i32, i32) {
    %c0_i32 = arith.constant 0 : i32
    %c0_i32_0 = arith.constant 0 : i32
    %c0_i32_1 = arith.constant 0 : i32
    return %c0_i32, %c0_i32_0 : i32, i32
  }
  func.func @transform_4(%arg0: i32) -> (i32, i32) {
    %c0_i32 = arith.constant 0 : i32
    %c0_i32_0 = arith.constant 0 : i32
    %c0_i32_1 = arith.constant 0 : i32
    return %c0_i32, %c0_i32_0 : i32, i32
  }
  func.func @transform_5(%arg0: i32) -> (i32, i32) {
    %c0_i32 = arith.constant 0 : i32
    %c0_i32_0 = arith.constant 0 : i32
    %c0_i32_1 = arith.constant 0 : i32
    return %c0_i32, %c0_i32_0 : i32, i32
  }
  func.func @transform_6(%arg0: i32) -> (i32, i32) {
    %c0_i32 = arith.constant 0 : i32
    %c0_i32_0 = arith.constant 0 : i32
    %c0_i32_1 = arith.constant 0 : i32
    return %c0_i32, %c0_i32_0 : i32, i32
  }
  func.func @transform_7(%arg0: i32) -> (i32, i32) {
    %c0_i32 = arith.constant 0 : i32
    %c0_i32_0 = arith.constant 0 : i32
    %c0_i32_1 = arith.constant 0 : i32
    return %c0_i32, %c0_i32_0 : i32, i32
  }
  func.func @transform_8(%arg0: i32) -> (i32, i32) {
    %c0_i32 = arith.constant 0 : i32
    %c0_i32_0 = arith.constant 0 : i32
    %c0_i32_1 = arith.constant 0 : i32
    return %c0_i32, %c0_i32_0 : i32, i32
  }
  func.func @transform_9(%arg0: i32) -> (i32, i32) {
    %c0_i32 = arith.constant 0 : i32
    %c0_i32_0 = arith.constant 0 : i32
    %c0_i32_1 = arith.constant 0 : i32
    return %c0_i32, %c0_i32_0 : i32, i32
  }
  func.func @transform_10(%arg0: i32) -> (i32, i32) {
    %c0_i32 = arith.constant 0 : i32
    %c0_i32_0 = arith.constant 0 : i32
    %c0_i32_1 = arith.constant 0 : i32
    return %c0_i32, %c0_i32_0 : i32, i32
  }
  func.func @transform_11(%arg0: i32) -> (i32, i32) {
    %c0_i32 = arith.constant 0 : i32
    %c0_i32_0 = arith.constant 0 : i32
    return %arg0, %c0_i32 : i32, i32
  }
  func.func @transform_12(%arg0: i32) -> (i32, i32) {
    %c0_i32 = arith.constant 0 : i32
    %c0_i32_0 = arith.constant 0 : i32
    return %arg0, %c0_i32 : i32, i32
  }
}

</mosaic_0001>

<llo_original>
// kernel: earthquake_forward.1
$region0: #{earthquake_forward.1}
  #allocation0 [shape = 'u32[]', space=smem, size = 0x4, offset = 0x4, fixed_abs, tag = 'smem constant byte address 0x4 - core index']
  #allocation1 [shape = 'u32[144,128]{1,0:T(1,128)}', space=vmem, size = 0x12000, scoped, tag = 'internal scratch']
  %s0 = inlined_call_operand.vmem [shape: f32[64,16], index: 0, kind: input, shape index: {}]
  %s1 = inlined_call_operand.vmem [shape: bf16[16,64], index: 1, kind: input, shape index: {}]
  %s2 = inlined_call_operand.vmem [shape: f32[1,64], index: 2, kind: input, shape index: {}]
  %s3 = inlined_call_operand.vmem [shape: bf16[64,128], index: 3, kind: input, shape index: {}]
  %s4 = inlined_call_operand.vmem [shape: f32[1,128], index: 4, kind: input, shape index: {}]
  %s5 = inlined_call_operand.vmem [shape: bf16[128,64], index: 5, kind: input, shape index: {}]
  %s6 = inlined_call_operand.vmem [shape: f32[1,64], index: 6, kind: input, shape index: {}]
  %s7 = inlined_call_operand.vmem [shape: bf16[64,5], index: 7, kind: input, shape index: {}]
  %s8 = inlined_call_operand.vmem [shape: f32[1,5], index: 8, kind: input, shape index: {}]
  %s9 = inlined_call_operand.vmem [shape: bf16[64,2], index: 9, kind: input, shape index: {}]
  %s10 = inlined_call_operand.vmem [shape: f32[1,2], index: 10, kind: input, shape index: {}]
  %s11 = inlined_call_operand.vmem [shape: f32[64,5], index: 11, kind: output, shape index: {0}]
  %s12 = inlined_call_operand.vmem [shape: f32[64,2], index: 12, kind: output, shape index: {1}]
  %13 = xla_tuple %s11, %s12
  %s14 = sld [smem:[#allocation0]]
  $region85: #{earthquake_forward.1} parent=0
    _
  %s16 = ssub.s32 1, %s14
  %s17 = scalar_select 0, %s16, %s14
  loop: start=0, step=1, limit=6
  $region2: #{earthquake_forward.1} parent=0 // loop_pre_header
    _
  $region3: #{earthquake_forward.1} parent=0 // loop_header
    %s19 = sphi 0, %s23
    %p20 = scmp.ge.s32.totalorder %s19, 6
    %s29 = sphi 0, %s31
    %s32 = sphi 0, %s29
    %s33 = sphi 0, %s32
    %s49 = sphi 0, %s33
    %s53 = sphi 0, %s53
    %s55 = sphi 0, %s53
    %s56 = sphi 0, %s55
    %s70 = sphi 0, %s56
    %s74 = sphi 0, %s74
    %s76 = sphi 0, %s74
    %s77 = sphi 0, %s76
    %s91 = sphi 0, %s77
    %s95 = sphi 0, %s95
    %s97 = sphi 0, %s95
    %s98 = sphi 0, %s97
    %s112 = sphi 0, %s98
    %s116 = sphi 0, %s116
    %s118 = sphi 0, %s116
    %s119 = sphi 0, %s118
    %s133 = sphi 0, %s119
    %s137 = sphi 0, %s137
    %s139 = sphi 0, %s137
    %s140 = sphi 0, %s139
    %s154 = sphi 0, %s140
    %s158 = sphi 0, %s158
    %s160 = sphi 0, %s158
    %s161 = sphi 0, %s160
    %s175 = sphi 0, %s161
    %s179 = sphi 0, %s179
    %s181 = sphi 0, %s179
    %s182 = sphi 0, %s181
    %s196 = sphi 0, %s182
    %s200 = sphi 0, %s200
    %s202 = sphi 0, %s200
    %s203 = sphi 0, %s202
    %s217 = sphi 0, %s203
    %s221 = sphi 0, %s221
    %s223 = sphi 0, %s221
    %s224 = sphi 0, %s223
    %s238 = sphi 0, %s224
    %s242 = sphi 0, %s242
    %s244 = sphi 0, %s242
    %s245 = sphi 0, %s244
    %s259 = sphi 0, %s245
    %s265 = sphi 0, %s267
    %s268 = sphi 0, %s265
    %s269 = sphi 0, %s268
    %s285 = sphi 0, %s269
    %s291 = sphi 0, %s293
    %s294 = sphi 0, %s291
    %s295 = sphi 0, %s294
    %s311 = sphi 0, %s295
  $region4: #{earthquake_forward.1} parent=0 // loop_header_branch
    %22 = sbr.rel (%p20) target = $region8
  $region5: #{earthquake_forward.1} parent=0 // loop_body
    %s24 = ssub.s32 %s19, 1
    %s25 = ssub.s32 %s19, 2
    %s26 = sadd.s32 %s19, 1
    %s27 = ssub.s32 %s19, %s26
    %p28 = scmp.eq.s32.totalorder %s27, 0
    %s30 = sadd.s32 %s29, 1
    %s31 = scalar_select %p28, %s29, %s30
    %p34 = pneg %p28
    %p35 = scmp.eq.s32.totalorder %s19, 3
    %p36 = por %p34, %p35
    %p37 = scmp.ne.s32.totalorder %s29, %s32
    %p38 = scmp.eq.s32.totalorder %s19, 0
    %p39 = por %p37, %p38
    %p40 = scmp.ne.s32.totalorder %s29, %s32
    %p41 = scmp.eq.s32.totalorder %s24, 3
    %p42 = por %p40, %p41
    %p43 = scmp.ne.s32.totalorder %s32, %s33
    %p44 = scmp.eq.s32.totalorder %s24, 0
    %p45 = por %p43, %p44
    %p46 = scmp.ne.s32.totalorder %s32, %s33
    %p47 = scmp.eq.s32.totalorder %s25, 3
    %p48 = por %p46, %p47
    %p50 = scmp.ne.s32.totalorder %s33, %s49
    %p51 = scmp.eq.s32.totalorder %s25, 0
    %p52 = por %p50, %p51
    %s54 = sadd.s32 %s53, 1
    %p57 = scmp.eq.s32.totalorder %s19, 3
    %p58 = scmp.ne.s32.totalorder %s53, %s55
    %p59 = scmp.eq.s32.totalorder %s19, 0
    %p60 = por %p58, %p59
    %p61 = scmp.ne.s32.totalorder %s53, %s55
    %p62 = scmp.eq.s32.totalorder %s24, 3
    %p63 = por %p61, %p62
    %p64 = scmp.ne.s32.totalorder %s55, %s56
    %p65 = scmp.eq.s32.totalorder %s24, 0
    %p66 = por %p64, %p65
    %p67 = scmp.ne.s32.totalorder %s55, %s56
    %p68 = scmp.eq.s32.totalorder %s25, 3
    %p69 = por %p67, %p68
    %p71 = scmp.ne.s32.totalorder %s56, %s70
    %p72 = scmp.eq.s32.totalorder %s25, 0
    %p73 = por %p71, %p72
    %s75 = sadd.s32 %s74, 1
    %p78 = scmp.eq.s32.totalorder %s19, 3
    %p79 = scmp.ne.s32.totalorder %s74, %s76
    %p80 = scmp.eq.s32.totalorder %s19, 0
    %p81 = por %p79, %p80
    %p82 = scmp.ne.s32.totalorder %s74, %s76
    %p83 = scmp.eq.s32.totalorder %s24, 3
    %p84 = por %p82, %p83
    %p85 = scmp.ne.s32.totalorder %s76, %s77
    %p86 = scmp.eq.s32.totalorder %s24, 0
    %p87 = por %p85, %p86
    %p88 = scmp.ne.s32.totalorder %s76, %s77
    %p89 = scmp.eq.s32.totalorder %s25, 3
    %p90 = por %p88, %p89
    %p92 = scmp.ne.s32.totalorder %s77, %s91
    %p93 = scmp.eq.s32.totalorder %s25, 0
    %p94 = por %p92, %p93
    %s96 = sadd.s32 %s95, 1
    %p99 = scmp.eq.s32.totalorder %s19, 3
    %p100 = scmp.ne.s32.totalorder %s95, %s97
    %p101 = scmp.eq.s32.totalorder %s19, 0
    %p102 = por %p100, %p101
    %p103 = scmp.ne.s32.totalorder %s95, %s97
    %p104 = scmp.eq.s32.totalorder %s24, 3
    %p105 = por %p103, %p104
    %p106 = scmp.ne.s32.totalorder %s97, %s98
    %p107 = scmp.eq.s32.totalorder %s24, 0
    %p108 = por %p106, %p107
    %p109 = scmp.ne.s32.totalorder %s97, %s98
    %p110 = scmp.eq.s32.totalorder %s25, 3
    %p111 = por %p109, %p110
    %p113 = scmp.ne.s32.totalorder %s98, %s112
    %p114 = scmp.eq.s32.totalorder %s25, 0
    %p115 = por %p113, %p114
    %s117 = sadd.s32 %s116, 1
    %p120 = scmp.eq.s32.totalorder %s19, 3
    %p121 = scmp.ne.s32.totalorder %s116, %s118
    %p122 = scmp.eq.s32.totalorder %s19, 0
    %p123 = por %p121, %p122
    %p124 = scmp.ne.s32.totalorder %s116, %s118
    %p125 = scmp.eq.s32.totalorder %s24, 3
    %p126 = por %p124, %p125
    %p127 = scmp.ne.s32.totalorder %s118, %s119
    %p128 = scmp.eq.s32.totalorder %s24, 0
    %p129 = por %p127, %p128
    %p130 = scmp.ne.s32.totalorder %s118, %s119
    %p131 = scmp.eq.s32.totalorder %s25, 3
    %p132 = por %p130, %p131
    %p134 = scmp.ne.s32.totalorder %s119, %s133
    %p135 = scmp.eq.s32.totalorder %s25, 0
    %p136 = por %p134, %p135
    %s138 = sadd.s32 %s137, 1
    %p141 = scmp.eq.s32.totalorder %s19, 3
    %p142 = scmp.ne.s32.totalorder %s137, %s139
    %p143 = scmp.eq.s32.totalorder %s19, 0
    %p144 = por %p142, %p143
    %p145 = scmp.ne.s32.totalorder %s137, %s139
    %p146 = scmp.eq.s32.totalorder %s24, 3
    %p147 = por %p145, %p146
    %p148 = scmp.ne.s32.totalorder %s139, %s140
    %p149 = scmp.eq.s32.totalorder %s24, 0
    %p150 = por %p148, %p149
    %p151 = scmp.ne.s32.totalorder %s139, %s140
    %p152 = scmp.eq.s32.totalorder %s25, 3
    %p153 = por %p151, %p152
    %p155 = scmp.ne.s32.totalorder %s140, %s154
    %p156 = scmp.eq.s32.totalorder %s25, 0
    %p157 = por %p155, %p156
    %s159 = sadd.s32 %s158, 1
    %p162 = scmp.eq.s32.totalorder %s19, 3
    %p163 = scmp.ne.s32.totalorder %s158, %s160
    %p164 = scmp.eq.s32.totalorder %s19, 0
    %p165 = por %p163, %p164
    %p166 = scmp.ne.s32.totalorder %s158, %s160
    %p167 = scmp.eq.s32.totalorder %s24, 3
    %p168 = por %p166, %p167
    %p169 = scmp.ne.s32.totalorder %s160, %s161
    %p170 = scmp.eq.s32.totalorder %s24, 0
    %p171 = por %p169, %p170
    %p172 = scmp.ne.s32.totalorder %s160, %s161
    %p173 = scmp.eq.s32.totalorder %s25, 3
    %p174 = por %p172, %p173
    %p176 = scmp.ne.s32.totalorder %s161, %s175
    %p177 = scmp.eq.s32.totalorder %s25, 0
    %p178 = por %p176, %p177
    %s180 = sadd.s32 %s179, 1
    %p183 = scmp.eq.s32.totalorder %s19, 3
    %p184 = scmp.ne.s32.totalorder %s179, %s181
    %p185 = scmp.eq.s32.totalorder %s19, 0
    %p186 = por %p184, %p185
    %p187 = scmp.ne.s32.totalorder %s179, %s181
    %p188 = scmp.eq.s32.totalorder %s24, 3
    %p189 = por %p187, %p188
    %p190 = scmp.ne.s32.totalorder %s181, %s182
    %p191 = scmp.eq.s32.totalorder %s24, 0
    %p192 = por %p190, %p191
    %p193 = scmp.ne.s32.totalorder %s181, %s182
    %p194 = scmp.eq.s32.totalorder %s25, 3
    %p195 = por %p193, %p194
    %p197 = scmp.ne.s32.totalorder %s182, %s196
    %p198 = scmp.eq.s32.totalorder %s25, 0
    %p199 = por %p197, %p198
    %s201 = sadd.s32 %s200, 1
    %p204 = scmp.eq.s32.totalorder %s19, 3
    %p205 = scmp.ne.s32.totalorder %s200, %s202
    %p206 = scmp.eq.s32.totalorder %s19, 0
    %p207 = por %p205, %p206
    %p208 = scmp.ne.s32.totalorder %s200, %s202
    %p209 = scmp.eq.s32.totalorder %s24, 3
    %p210 = por %p208, %p209
    %p211 = scmp.ne.s32.totalorder %s202, %s203
    %p212 = scmp.eq.s32.totalorder %s24, 0
    %p213 = por %p211, %p212
    %p214 = scmp.ne.s32.totalorder %s202, %s203
    %p215 = scmp.eq.s32.totalorder %s25, 3
    %p216 = por %p214, %p215
    %p218 = scmp.ne.s32.totalorder %s203, %s217
    %p219 = scmp.eq.s32.totalorder %s25, 0
    %p220 = por %p218, %p219
    %s222 = sadd.s32 %s221, 1
    %p225 = scmp.eq.s32.totalorder %s19, 3
    %p226 = scmp.ne.s32.totalorder %s221, %s223
    %p227 = scmp.eq.s32.totalorder %s19, 0
    %p228 = por %p226, %p227
    %p229 = scmp.ne.s32.totalorder %s221, %s223
    %p230 = scmp.eq.s32.totalorder %s24, 3
    %p231 = por %p229, %p230
    %p232 = scmp.ne.s32.totalorder %s223, %s224
    %p233 = scmp.eq.s32.totalorder %s24, 0
    %p234 = por %p232, %p233
    %p235 = scmp.ne.s32.totalorder %s223, %s224
    %p236 = scmp.eq.s32.totalorder %s25, 3
    %p237 = por %p235, %p236
    %p239 = scmp.ne.s32.totalorder %s224, %s238
    %p240 = scmp.eq.s32.totalorder %s25, 0
    %p241 = por %p239, %p240
    %s243 = sadd.s32 %s242, 1
    %p246 = scmp.eq.s32.totalorder %s19, 3
    %p247 = scmp.ne.s32.totalorder %s242, %s244
    %p248 = scmp.eq.s32.totalorder %s19, 0
    %p249 = por %p247, %p248
    %p250 = scmp.ne.s32.totalorder %s242, %s244
    %p251 = scmp.eq.s32.totalorder %s24, 3
    %p252 = por %p250, %p251
    %p253 = scmp.ne.s32.totalorder %s244, %s245
    %p254 = scmp.eq.s32.totalorder %s24, 0
    %p255 = por %p253, %p254
    %p256 = scmp.ne.s32.totalorder %s244, %s245
    %p257 = scmp.eq.s32.totalorder %s25, 3
    %p258 = por %p256, %p257
    %p260 = scmp.ne.s32.totalorder %s245, %s259
    %p261 = scmp.eq.s32.totalorder %s25, 0
    %p262 = por %p260, %p261
    %s263 = ssub.s32 %s19, %s26
    %p264 = scmp.eq.s32.totalorder %s263, 0
    %s266 = sadd.s32 %s265, 1
    %s267 = scalar_select %p264, %s265, %s266
    %p270 = pneg %p264
    %p271 = scmp.eq.s32.totalorder %s19, 3
    %p272 = por %p270, %p271
    %p273 = scmp.ne.s32.totalorder %s265, %s268
    %p274 = scmp.eq.s32.totalorder %s19, 0
    %p275 = por %p273, %p274
    %p276 = scmp.ne.s32.totalorder %s265, %s268
    %p277 = scmp.eq.s32.totalorder %s24, 3
    %p278 = por %p276, %p277
    %p279 = scmp.ne.s32.totalorder %s268, %s269
    %p280 = scmp.eq.s32.totalorder %s24, 0
    %p281 = por %p279, %p280
    %p282 = scmp.ne.s32.totalorder %s268, %s269
    %p283 = scmp.eq.s32.totalorder %s25, 3
    %p284 = por %p282, %p283
    %p286 = scmp.ne.s32.totalorder %s269, %s285
    %p287 = scmp.eq.s32.totalorder %s25, 0
    %p288 = por %p286, %p287
    %s289 = ssub.s32 %s19, %s26
    %p290 = scmp.eq.s32.totalorder %s289, 0
    %s292 = sadd.s32 %s291, 1
    %s293 = scalar_select %p290, %s291, %s292
    %p296 = pneg %p290
    %p297 = scmp.eq.s32.totalorder %s19, 3
    %p298 = por %p296, %p297
    %p299 = scmp.ne.s32.totalorder %s291, %s294
    %p300 = scmp.eq.s32.totalorder %s19, 0
    %p301 = por %p299, %p300
    %p302 = scmp.ne.s32.totalorder %s291, %s294
    %p303 = scmp.eq.s32.totalorder %s24, 3
    %p304 = por %p302, %p303
    %p305 = scmp.ne.s32.totalorder %s294, %s295
    %p306 = scmp.eq.s32.totalorder %s24, 0
    %p307 = por %p305, %p306
    %p308 = scmp.ne.s32.totalorder %s294, %s295
    %p309 = scmp.eq.s32.totalorder %s25, 3
    %p310 = por %p308, %p309
    %p312 = scmp.ne.s32.totalorder %s295, %s311
    %p313 = scmp.eq.s32.totalorder %s25, 0
    %p314 = por %p312, %p313
    %p315 = scmp.le.s32.totalorder 1, %s19
    %p316 = scmp.lt.s32.totalorder %s19, 5
    %p317 = pnand %p315, %p316
    %p318 = pneg %p317
    // Predicated region
    $region9: #{earthquake_forward.1} parent=5 // pred_check
      _
    $region10: #{earthquake_forward.1} parent=5 // pred_check_branch
      %320 = sbr.rel (%p317) target = $region12
    $region11: #{earthquake_forward.1} parent=5 // pred_region
      %s321 = ssub.s32 %s19, 1
      // Predicated region
      $region13: #{earthquake_forward.1} parent=11 // pred_check
        %p322 = pneg %p66
      $region14: #{earthquake_forward.1} parent=11 // pred_check_branch
        %324 = sbr.rel (%p322) target = $region16
      $region15: #{earthquake_forward.1} parent=11 // pred_region
        _
      $region16: #{earthquake_forward.1} parent=11 // pred_fallthru
        _
      // Predicated region
      $region17: #{earthquake_forward.1} parent=11 // pred_check
        %p325 = pneg %p87
      $region18: #{earthquake_forward.1} parent=11 // pred_check_branch
        %327 = sbr.rel (%p325) target = $region20
      $region19: #{earthquake_forward.1} parent=11 // pred_region
        _
      $region20: #{earthquake_forward.1} parent=11 // pred_fallthru
        _
      // Predicated region
      $region21: #{earthquake_forward.1} parent=11 // pred_check
        %p328 = pneg %p108
      $region22: #{earthquake_forward.1} parent=11 // pred_check_branch
        %330 = sbr.rel (%p328) target = $region24
      $region23: #{earthquake_forward.1} parent=11 // pred_region
        _
      $region24: #{earthquake_forward.1} parent=11 // pred_fallthru
        _
      // Predicated region
      $region25: #{earthquake_forward.1} parent=11 // pred_check
        %p331 = pneg %p129
      $region26: #{earthquake_forward.1} parent=11 // pred_check_branch
        %333 = sbr.rel (%p331) target = $region28
      $region27: #{earthquake_forward.1} parent=11 // pred_region
        _
      $region28: #{earthquake_forward.1} parent=11 // pred_fallthru
        _
      // Predicated region
      $region29: #{earthquake_forward.1} parent=11 // pred_check
        %p334 = pneg %p150
      $region30: #{earthquake_forward.1} parent=11 // pred_check_branch
        %336 = sbr.rel (%p334) target = $region32
      $region31: #{earthquake_forward.1} parent=11 // pred_region
        _
      $region32: #{earthquake_forward.1} parent=11 // pred_fallthru
        _
      // Predicated region
      $region33: #{earthquake_forward.1} parent=11 // pred_check
        %p337 = pneg %p171
      $region34: #{earthquake_forward.1} parent=11 // pred_check_branch
        %339 = sbr.rel (%p337) target = $region36
      $region35: #{earthquake_forward.1} parent=11 // pred_region
        _
      $region36: #{earthquake_forward.1} parent=11 // pred_fallthru
        _
      // Predicated region
      $region37: #{earthquake_forward.1} parent=11 // pred_check
        %p340 = pneg %p192
      $region38: #{earthquake_forward.1} parent=11 // pred_check_branch
        %342 = sbr.rel (%p340) target = $region40
      $region39: #{earthquake_forward.1} parent=11 // pred_region
        _
      $region40: #{earthquake_forward.1} parent=11 // pred_fallthru
        _
      // Predicated region
      $region41: #{earthquake_forward.1} parent=11 // pred_check
        %p343 = pneg %p213
      $region42: #{earthquake_forward.1} parent=11 // pred_check_branch
        %345 = sbr.rel (%p343) target = $region44
      $region43: #{earthquake_forward.1} parent=11 // pred_region
        _
      $region44: #{earthquake_forward.1} parent=11 // pred_fallthru
        _
      // Predicated region
      $region45: #{earthquake_forward.1} parent=11 // pred_check
        %p346 = pneg %p234
      $region46: #{earthquake_forward.1} parent=11 // pred_check_branch
        %348 = sbr.rel (%p346) target = $region48
      $region47: #{earthquake_forward.1} parent=11 // pred_region
        _
      $region48: #{earthquake_forward.1} parent=11 // pred_fallthru
        _
      // Predicated region
      $region49: #{earthquake_forward.1} parent=11 // pred_check
        %p349 = pneg %p255
      $region50: #{earthquake_forward.1} parent=11 // pred_check_branch
        %351 = sbr.rel (%p349) target = $region52
      $region51: #{earthquake_forward.1} parent=11 // pred_region
        _
      $region52: #{earthquake_forward.1} parent=11 // pred_fallthru
        _
    $region12: #{earthquake_forward.1} parent=5 // pred_fallthru
      _
    %p352 = scmp.lt.s32.totalorder %s19, 4
    // Predicated region
    $region53: #{earthquake_forward.1} parent=5 // pred_check
      %p353 = pneg %p352
    $region54: #{earthquake_forward.1} parent=5 // pred_check_branch
      %355 = sbr.rel (%p353) target = $region56
    $region55: #{earthquake_forward.1} parent=5 // pred_region
      // Predicated region
      $region57: #{earthquake_forward.1} parent=55 // pred_check
        %p356 = pneg %p39
      $region58: #{earthquake_forward.1} parent=55 // pred_check_branch
        %358 = sbr.rel (%p356) target = $region60
      $region59: #{earthquake_forward.1} parent=55 // pred_region
        %s359 = smul.u32 2, %s19
        %p360 = scmp.lt.s32.totalorder %s359, 7
        %s361 = scalar_select %p360, %s359, 7
        %s362 = smul.addr %s361, 8
        %s363 = scalar_lea.vmem %s0, %s362
        %s364 = smul.u32 2, %s19
      $region60: #{earthquake_forward.1} parent=55 // pred_fallthru
        _
    $region56: #{earthquake_forward.1} parent=5 // pred_fallthru
      _
    %p365 = scmp.le.s32.totalorder 1, %s19
    %p366 = scmp.lt.s32.totalorder %s19, 5
    %p367 = pnand %p365, %p366
    %p368 = pneg %p367
    // Predicated region
    $region61: #{earthquake_forward.1} parent=5 // pred_check
      _
    $region62: #{earthquake_forward.1} parent=5 // pred_check_branch
      %370 = sbr.rel (%p367) target = $region64
    $region63: #{earthquake_forward.1} parent=5 // pred_region
      %s371 = ssub.s32 %s19, 1
      %s372 = smul.u32 2, %s24
      %p373 = scmp.lt.s32.totalorder %s372, 7
      %s374 = scalar_select %p373, %s372, 7
      %s375 = smul.addr %s374, 8
      %s376 = scalar_lea.vmem %s0, %s375
      %p377 = pneg %p45
      %p378 = pneg %p42
      %p379 = pneg %p66
      %p380 = pneg %p63
      %p381 = pneg %p87
      %p382 = pneg %p84
      %p383 = pneg %p108
      %p384 = pneg %p105
      %p385 = pneg %p129
      %p386 = pneg %p126
      %p387 = pneg %p150
      %p388 = pneg %p147
      %p389 = pneg %p171
      %p390 = pneg %p168
      %p391 = pneg %p192
      %p392 = pneg %p189
      %p393 = pneg %p213
      %p394 = pneg %p210
      %p395 = pneg %p234
      %p396 = pneg %p231
      %p397 = pneg %p255
      %p398 = pneg %p252
      %p399 = pneg %p281
      %p400 = pneg %p278
      %s401 = smul.u32 2, %s24
      %p402 = scmp.lt.s32.totalorder %s401, 7
      %s403 = scalar_select %p402, %s401, 7
      %s404 = smul.addr %s403, 8
      %s405 = scalar_lea.vmem %s11, %s404
      %p406 = pneg %p307
      %p407 = pneg %p304
      %s408 = smul.u32 2, %s24
      %p409 = scmp.lt.s32.totalorder %s408, 7
      %s410 = scalar_select %p409, %s408, 7
      %s411 = smul.addr %s410, 8
      %s412 = scalar_lea.vmem %s12, %s411
      %s413 = smul.u32 2, %s24
      %p414 = scmp.lt.s32.totalorder %s413, 7
      %s415 = scalar_select %p414, %s413, 7
      %s416 = smul.addr %s415, 8
      %s417 = scalar_lea.vmem %s0, %s416
      %s418 = smul.u32 2, %s24
      %s419 = smul.u32 2, %s24
      %p420 = scmp.lt.s32.totalorder %s419, 7
      %s421 = scalar_select %p420, %s419, 7
      %s422 = smul.addr %s421, 8
      %s423 = scalar_lea.vmem %s11, %s422
      %s424 = smul.u32 2, %s24
      %s425 = smul.u32 2, %s24
      %p426 = scmp.lt.s32.totalorder %s425, 7
      %s427 = scalar_select %p426, %s425, 7
      %s428 = smul.addr %s427, 8
      %s429 = scalar_lea.vmem %s12, %s428
      %s430 = smul.u32 2, %s24
      %v432 = vld [vmem:[%s417] sm:$0xff]
      %v433 = vld [vmem:[%s417 + $0x8] sm:$0xff]
      %v434 = vpack.c.bf16 %v433, %v432
      %v435 = vld [vmem:[%s1] sm:$0xf]
      %v436 = vld [vmem:[%s1 + $0x4] sm:$0xf]
      %v437 = vld [vmem:[%s2] sm:$0x1]
      %v439 = vlaneseq
      %v440 = vshrl.u32 %v439, 7
      %v441 = vsub.s32 0, %v440
      %v442 = vrot.slane %v437, %v441
      %v446 = vunpack.c.l.b16 %v435
      %v447 = vunpack.c.l.b16 %v436
      %v448 = vpack.c.b16 %v447, %v446
      %vm450 = vcmask 130048
      %v452 = vsel %vm450, %v434, 0
      %454 = vmatprep.subr.bf16.mxu0 0
      %455 = vmatpush1.bf16.msra.mxu0 %v448
      %456 = vmatprep.subr.bf16.mxu0 0
      %457 = vmatpush1.bf16.msra.mxu0 0
      %458 = vmatprep.subr.bf16.mxu0 0
      %459 = vmatpush1.bf16.msra.mxu0 0
      %460 = vmatprep.subr.bf16.mxu0 0
      %461 = vmatpush1.bf16.msra.mxu0 0
      %462 = vmatprep.subr.bf16.mxu0 0
      %463 = vmatpush1.bf16.msra.mxu0 0
      %464 = vmatprep.subr.bf16.mxu0 0
      %465 = vmatpush1.bf16.msra.mxu0 0
      %466 = vmatprep.subr.bf16.mxu0 0
      %467 = vmatpush1.bf16.msra.mxu0 0
      %468 = vmatprep.subr.bf16.mxu0 0
      %469 = vmatpush1.bf16.msra.mxu0 0
      %470 = vmatprep.subr.bf16.mxu0 0
      %471 = vmatpush1.bf16.msra.mxu0 0
      %472 = vmatprep.subr.bf16.mxu0 0
      %473 = vmatpush1.bf16.msra.mxu0 0
      %474 = vmatprep.subr.bf16.mxu0 0
      %475 = vmatpush1.bf16.msra.mxu0 0
      %476 = vmatprep.subr.bf16.mxu0 0
      %477 = vmatpush1.bf16.msra.mxu0 0
      %478 = vmatprep.subr.bf16.mxu0 0
      %479 = vmatpush1.bf16.msra.mxu0 0
      %480 = vmatprep.subr.bf16.mxu0 0
      %481 = vmatpush1.bf16.msra.mxu0 0
      %482 = vmatprep.subr.bf16.mxu0 0
      %483 = vmatpush1.bf16.msra.mxu0 0
      %484 = vmatprep.subr.bf16.mxu0 0
      %485 = vmatpush1.bf16.msra.mxu0 0
      %486 = vmatprep.mubr.bf16.mxu0 0
      %487 = vmatmul.mubr.bf16.gmra.mrb[0].mxu0 %v452
      %v488 = vpop.f32.mrb[0].mxu0
      %v489 = vadd.f32 %v442, %v488
      %v490 = vpop.f32.mrb[0].mxu0
      %v491 = vpop.f32.mrb[0].mxu0
      %v492 = vadd.f32 %v442, %v491
      %v493 = vpop.f32.mrb[0].mxu0
      %494 = vdwg.mxu0
      %vm495 = vcmp.ge.f32.partialorder %v489, 0.0
      %vm496 = vcmp.ge.f32.partialorder %v492, 0.0
      %v497 = vmul.f32 %v489, 0.01
      %v498 = vmul.f32 %v492, 0.01
      %v499 = vsel %vm495, %v489, %v497
      %v500 = vsel %vm496, %v492, %v498
      %v501 = vpack.c.bf16 %v500, %v499
      %v502 = vld [vmem:[%s3] sm:$0xf]
      %v503 = vld [vmem:[%s3 + $0x4] sm:$0xf]
      %v504 = vld [vmem:[%s3 + $0x8] sm:$0xf]
      %v505 = vld [vmem:[%s3 + $0xc] sm:$0xf]
      %v506 = vld [vmem:[%s3 + $0x10] sm:$0xf]
      %v507 = vld [vmem:[%s3 + $0x14] sm:$0xf]
      %v508 = vld [vmem:[%s3 + $0x18] sm:$0xf]
      %v509 = vld [vmem:[%s3 + $0x1c] sm:$0xf]
      %v510 = vld [vmem:[%s4] sm:$0x1]
      %v512 = vlaneseq
      %v513 = vshrl.u32 %v512, 7
      %v514 = vsub.s32 0, %v513
      %v515 = vrot.slane %v510, %v514
      %v525 = vunpack.c.l.b16 %v502
      %v526 = vunpack.c.l.b16 %v503
      %v527 = vunpack.c.l.b16 %v504
      %v528 = vunpack.c.l.b16 %v505
      %v529 = vunpack.c.l.b16 %v506
      %v530 = vunpack.c.l.b16 %v507
      %v531 = vunpack.c.l.b16 %v508
      %v532 = vunpack.c.l.b16 %v509
      %v533 = vpack.c.b16 %v526, %v525
      %v534 = vpack.c.b16 %v528, %v527
      %v535 = vpack.c.b16 %v530, %v529
      %v536 = vpack.c.b16 %v532, %v531
      %vm541 = vcmask 523264
      %v543 = vsel %vm541, %v501, 0
      %545 = vmatprep.subr.bf16.mxu0 0
      %546 = vmatpush1.bf16.msra.mxu0 %v533
      %547 = vmatprep.subr.bf16.mxu0 0
      %548 = vmatpush1.bf16.msra.mxu0 %v534
      %549 = vmatprep.subr.bf16.mxu0 0
      %550 = vmatpush1.bf16.msra.mxu0 %v535
      %551 = vmatprep.subr.bf16.mxu0 0
      %552 = vmatpush1.bf16.msra.mxu0 %v536
      %553 = vmatprep.subr.bf16.mxu0 0
      %554 = vmatpush1.bf16.msra.mxu0 0
      %555 = vmatprep.subr.bf16.mxu0 0
      %556 = vmatpush1.bf16.msra.mxu0 0
      %557 = vmatprep.subr.bf16.mxu0 0
      %558 = vmatpush1.bf16.msra.mxu0 0
      %559 = vmatprep.subr.bf16.mxu0 0
      %560 = vmatpush1.bf16.msra.mxu0 0
      %561 = vmatprep.subr.bf16.mxu0 0
      %562 = vmatpush1.bf16.msra.mxu0 0
      %563 = vmatprep.subr.bf16.mxu0 0
      %564 = vmatpush1.bf16.msra.mxu0 0
      %565 = vmatprep.subr.bf16.mxu0 0
      %566 = vmatpush1.bf16.msra.mxu0 0
      %567 = vmatprep.subr.bf16.mxu0 0
      %568 = vmatpush1.bf16.msra.mxu0 0
      %569 = vmatprep.subr.bf16.mxu0 0
      %570 = vmatpush1.bf16.msra.mxu0 0
      %571 = vmatprep.subr.bf16.mxu0 0
      %572 = vmatpush1.bf16.msra.mxu0 0
      %573 = vmatprep.subr.bf16.mxu0 0
      %574 = vmatpush1.bf16.msra.mxu0 0
      %575 = vmatprep.subr.bf16.mxu0 0
      %576 = vmatpush1.bf16.msra.mxu0 0
      %577 = vmatprep.mubr.bf16.mxu0 0
      %578 = vmatmul.mubr.bf16.gmra.mrb[0].mxu0 %v543
      %v579 = vpop.f32.mrb[0].mxu0
      %v580 = vadd.f32 %v515, %v579
      %v581 = vpop.f32.mrb[0].mxu0
      %v582 = vpop.f32.mrb[0].mxu0
      %v583 = vadd.f32 %v515, %v582
      %v584 = vpop.f32.mrb[0].mxu0
      %585 = vdwg.mxu0
      %vm586 = vcmp.ge.f32.partialorder %v580, 0.0
      %vm587 = vcmp.ge.f32.partialorder %v583, 0.0
      %v588 = vmul.f32 %v580, 0.01
      %v589 = vmul.f32 %v583, 0.01
      %v590 = vsel %vm586, %v580, %v588
      %v591 = vsel %vm587, %v583, %v589
      %v592 = vpack.c.bf16 %v591, %v590
      %v593 = vld [vmem:[%s5] sm:$0xf]
      %v594 = vld [vmem:[%s5 + $0x4] sm:$0xf]
      %v595 = vld [vmem:[%s5 + $0x8] sm:$0xf]
      %v596 = vld [vmem:[%s5 + $0xc] sm:$0xf]
      %v597 = vld [vmem:[%s5 + $0x10] sm:$0xf]
      %v598 = vld [vmem:[%s5 + $0x14] sm:$0xf]
      %v599 = vld [vmem:[%s5 + $0x18] sm:$0xf]
      %v600 = vld [vmem:[%s5 + $0x1c] sm:$0xf]
      %v601 = vld [vmem:[%s5 + $0x20] sm:$0xf]
      %v602 = vld [vmem:[%s5 + $0x24] sm:$0xf]
      %v603 = vld [vmem:[%s5 + $0x28] sm:$0xf]
      %v604 = vld [vmem:[%s5 + $0x2c] sm:$0xf]
      %v605 = vld [vmem:[%s5 + $0x30] sm:$0xf]
      %v606 = vld [vmem:[%s5 + $0x34] sm:$0xf]
      %v607 = vld [vmem:[%s5 + $0x38] sm:$0xf]
      %v608 = vld [vmem:[%s5 + $0x3c] sm:$0xf]
      %v609 = vld [vmem:[%s6] sm:$0x1]
      %v611 = vlaneseq
      %v612 = vshrl.u32 %v611, 7
      %v613 = vsub.s32 0, %v612
      %v614 = vrot.slane %v609, %v613
      %v632 = vunpack.c.l.b16 %v593
      %v633 = vunpack.c.l.b16 %v594
      %v634 = vunpack.c.l.b16 %v595
      %v635 = vunpack.c.l.b16 %v596
      %v636 = vunpack.c.l.b16 %v597
      %v637 = vunpack.c.l.b16 %v598
      %v638 = vunpack.c.l.b16 %v599
      %v639 = vunpack.c.l.b16 %v600
      %v640 = vunpack.c.l.b16 %v601
      %v641 = vunpack.c.l.b16 %v602
      %v642 = vunpack.c.l.b16 %v603
      %v643 = vunpack.c.l.b16 %v604
      %v644 = vunpack.c.l.b16 %v605
      %v645 = vunpack.c.l.b16 %v606
      %v646 = vunpack.c.l.b16 %v607
      %v647 = vunpack.c.l.b16 %v608
      %v648 = vpack.c.b16 %v633, %v632
      %v649 = vpack.c.b16 %v635, %v634
      %v650 = vpack.c.b16 %v637, %v636
      %v651 = vpack.c.b16 %v639, %v638
      %v652 = vpack.c.b16 %v641, %v640
      %v653 = vpack.c.b16 %v643, %v642
      %v654 = vpack.c.b16 %v645, %v644
      %v655 = vpack.c.b16 %v647, %v646
      %664 = vmatprep.subr.bf16.mxu0 0
      %665 = vmatpush1.bf16.msra.mxu0 %v648
      %666 = vmatprep.subr.bf16.mxu0 0
      %667 = vmatpush1.bf16.msra.mxu0 %v649
      %668 = vmatprep.subr.bf16.mxu0 0
      %669 = vmatpush1.bf16.msra.mxu0 %v650
      %670 = vmatprep.subr.bf16.mxu0 0
      %671 = vmatpush1.bf16.msra.mxu0 %v651
      %672 = vmatprep.subr.bf16.mxu0 0
      %673 = vmatpush1.bf16.msra.mxu0 %v652
      %674 = vmatprep.subr.bf16.mxu0 0
      %675 = vmatpush1.bf16.msra.mxu0 %v653
      %676 = vmatprep.subr.bf16.mxu0 0
      %677 = vmatpush1.bf16.msra.mxu0 %v654
      %678 = vmatprep.subr.bf16.mxu0 0
      %679 = vmatpush1.bf16.msra.mxu0 %v655
      %680 = vmatprep.subr.bf16.mxu0 0
      %681 = vmatpush1.bf16.msra.mxu0 0
      %682 = vmatprep.subr.bf16.mxu0 0
      %683 = vmatpush1.bf16.msra.mxu0 0
      %684 = vmatprep.subr.bf16.mxu0 0
      %685 = vmatpush1.bf16.msra.mxu0 0
      %686 = vmatprep.subr.bf16.mxu0 0
      %687 = vmatpush1.bf16.msra.mxu0 0
      %688 = vmatprep.subr.bf16.mxu0 0
      %689 = vmatpush1.bf16.msra.mxu0 0
      %690 = vmatprep.subr.bf16.mxu0 0
      %691 = vmatpush1.bf16.msra.mxu0 0
      %692 = vmatprep.subr.bf16.mxu0 0
      %693 = vmatpush1.bf16.msra.mxu0 0
      %694 = vmatprep.subr.bf16.mxu0 0
      %695 = vmatpush1.bf16.msra.mxu0 0
      %696 = vmatprep.mubr.bf16.mxu0 0
      %697 = vmatmul.mubr.bf16.gmra.mrb[0].mxu0 %v592
      %v698 = vpop.f32.mrb[0].mxu0
      %v699 = vadd.f32 %v614, %v698
      %v700 = vpop.f32.mrb[0].mxu0
      %v701 = vpop.f32.mrb[0].mxu0
      %v702 = vadd.f32 %v614, %v701
      %v703 = vpop.f32.mrb[0].mxu0
      %704 = vdwg.mxu0
      %vm705 = vcmp.ge.f32.partialorder %v699, 0.0
      %vm706 = vcmp.ge.f32.partialorder %v702, 0.0
      %v707 = vmul.f32 %v699, 0.01
      %v708 = vmul.f32 %v702, 0.01
      %v709 = vsel %vm705, %v699, %v707
      %v710 = vsel %vm706, %v702, %v708
      %v711 = vpack.c.bf16 %v710, %v709
      %v712 = vld [vmem:[%s7] sm:$0xf]
      %v713 = vld [vmem:[%s7 + $0x4] sm:$0xf]
      %v714 = vld [vmem:[%s7 + $0x8] sm:$0xf]
      %v715 = vld [vmem:[%s7 + $0xc] sm:$0xf]
      %v716 = vld [vmem:[%s7 + $0x10] sm:$0xf]
      %v717 = vld [vmem:[%s7 + $0x14] sm:$0xf]
      %v718 = vld [vmem:[%s7 + $0x18] sm:$0xf]
      %v719 = vld [vmem:[%s7 + $0x1c] sm:$0xf]
      %v720 = vld [vmem:[%s8] sm:$0x1]
      %v722 = vlaneseq
      %v723 = vshrl.u32 %v722, 7
      %v724 = vsub.s32 0, %v723
      %v725 = vrot.slane %v720, %v724
      %v735 = vunpack.c.l.b16 %v712
      %v736 = vunpack.c.l.b16 %v713
      %v737 = vunpack.c.l.b16 %v714
      %v738 = vunpack.c.l.b16 %v715
      %v739 = vunpack.c.l.b16 %v716
      %v740 = vunpack.c.l.b16 %v717
      %v741 = vunpack.c.l.b16 %v718
      %v742 = vunpack.c.l.b16 %v719
      %v743 = vpack.c.b16 %v736, %v735
      %v744 = vpack.c.b16 %v738, %v737
      %v745 = vpack.c.b16 %v740, %v739
      %v746 = vpack.c.b16 %v742, %v741
      %v752 = vsel %vm541, %v711, 0
      %754 = vmatprep.subr.bf16.mxu0 0
      %755 = vmatpush1.bf16.msra.mxu0 %v743
      %756 = vmatprep.subr.bf16.mxu0 0
      %757 = vmatpush1.bf16.msra.mxu0 %v744
      %758 = vmatprep.subr.bf16.mxu0 0
      %759 = vmatpush1.bf16.msra.mxu0 %v745
      %760 = vmatprep.subr.bf16.mxu0 0
      %761 = vmatpush1.bf16.msra.mxu0 %v746
      %762 = vmatprep.subr.bf16.mxu0 0
      %763 = vmatpush1.bf16.msra.mxu0 0
      %764 = vmatprep.subr.bf16.mxu0 0
      %765 = vmatpush1.bf16.msra.mxu0 0
      %766 = vmatprep.subr.bf16.mxu0 0
      %767 = vmatpush1.bf16.msra.mxu0 0
      %768 = vmatprep.subr.bf16.mxu0 0
      %769 = vmatpush1.bf16.msra.mxu0 0
      %770 = vmatprep.subr.bf16.mxu0 0
      %771 = vmatpush1.bf16.msra.mxu0 0
      %772 = vmatprep.subr.bf16.mxu0 0
      %773 = vmatpush1.bf16.msra.mxu0 0
      %774 = vmatprep.subr.bf16.mxu0 0
      %775 = vmatpush1.bf16.msra.mxu0 0
      %776 = vmatprep.subr.bf16.mxu0 0
      %777 = vmatpush1.bf16.msra.mxu0 0
      %778 = vmatprep.subr.bf16.mxu0 0
      %779 = vmatpush1.bf16.msra.mxu0 0
      %780 = vmatprep.subr.bf16.mxu0 0
      %781 = vmatpush1.bf16.msra.mxu0 0
      %782 = vmatprep.subr.bf16.mxu0 0
      %783 = vmatpush1.bf16.msra.mxu0 0
      %784 = vmatprep.subr.bf16.mxu0 0
      %785 = vmatpush1.bf16.msra.mxu0 0
      %786 = vmatprep.mubr.bf16.mxu0 0
      %787 = vmatmul.mubr.bf16.gmra.mrb[0].mxu0 %v752
      %v788 = vpop.f32.mrb[0].mxu0
      %v789 = vadd.f32 %v725, %v788
      %v790 = vpop.f32.mrb[0].mxu0
      %v791 = vpop.f32.mrb[0].mxu0
      %v792 = vadd.f32 %v725, %v791
      %v793 = vpop.f32.mrb[0].mxu0
      %794 = vdwg.mxu0
      %vm795 = vcmask 39936
      %796 = vst.msk [vmem:[%s423] sm:$0xff] %vm795, %v789
      %797 = vst.msk [vmem:[%s423 + $0x8] sm:$0xff] %vm795, %v792
      %v798 = vld [vmem:[%s9] sm:$0xf]
      %v799 = vld [vmem:[%s9 + $0x4] sm:$0xf]
      %v800 = vld [vmem:[%s9 + $0x8] sm:$0xf]
      %v801 = vld [vmem:[%s9 + $0xc] sm:$0xf]
      %v802 = vld [vmem:[%s9 + $0x10] sm:$0xf]
      %v803 = vld [vmem:[%s9 + $0x14] sm:$0xf]
      %v804 = vld [vmem:[%s9 + $0x18] sm:$0xf]
      %v805 = vld [vmem:[%s9 + $0x1c] sm:$0xf]
      %v806 = vld [vmem:[%s10] sm:$0x1]
      %v808 = vlaneseq
      %v809 = vshrl.u32 %v808, 7
      %v810 = vsub.s32 0, %v809
      %v811 = vrot.slane %v806, %v810
      %v821 = vunpack.c.l.b16 %v798
      %v822 = vunpack.c.l.b16 %v799
      %v823 = vunpack.c.l.b16 %v800
      %v824 = vunpack.c.l.b16 %v801
      %v825 = vunpack.c.l.b16 %v802
      %v826 = vunpack.c.l.b16 %v803
      %v827 = vunpack.c.l.b16 %v804
      %v828 = vunpack.c.l.b16 %v805
      %v829 = vpack.c.b16 %v822, %v821
      %v830 = vpack.c.b16 %v824, %v823
      %v831 = vpack.c.b16 %v826, %v825
      %v832 = vpack.c.b16 %v828, %v827
      %837 = vmatprep.subr.bf16.mxu0 0
      %838 = vmatpush1.bf16.msra.mxu0 %v829
      %839 = vmatprep.subr.bf16.mxu0 0
      %840 = vmatpush1.bf16.msra.mxu0 %v830
      %841 = vmatprep.subr.bf16.mxu0 0
      %842 = vmatpush1.bf16.msra.mxu0 %v831
      %843 = vmatprep.subr.bf16.mxu0 0
      %844 = vmatpush1.bf16.msra.mxu0 %v832
      %845 = vmatprep.subr.bf16.mxu0 0
      %846 = vmatpush1.bf16.msra.mxu0 0
      %847 = vmatprep.subr.bf16.mxu0 0
      %848 = vmatpush1.bf16.msra.mxu0 0
      %849 = vmatprep.subr.bf16.mxu0 0
      %850 = vmatpush1.bf16.msra.mxu0 0
      %851 = vmatprep.subr.bf16.mxu0 0
      %852 = vmatpush1.bf16.msra.mxu0 0
      %853 = vmatprep.subr.bf16.mxu0 0
      %854 = vmatpush1.bf16.msra.mxu0 0
      %855 = vmatprep.subr.bf16.mxu0 0
      %856 = vmatpush1.bf16.msra.mxu0 0
      %857 = vmatprep.subr.bf16.mxu0 0
      %858 = vmatpush1.bf16.msra.mxu0 0
      %859 = vmatprep.subr.bf16.mxu0 0
      %860 = vmatpush1.bf16.msra.mxu0 0
      %861 = vmatprep.subr.bf16.mxu0 0
      %862 = vmatpush1.bf16.msra.mxu0 0
      %863 = vmatprep.subr.bf16.mxu0 0
      %864 = vmatpush1.bf16.msra.mxu0 0
      %865 = vmatprep.subr.bf16.mxu0 0
      %866 = vmatpush1.bf16.msra.mxu0 0
      %867 = vmatprep.subr.bf16.mxu0 0
      %868 = vmatpush1.bf16.msra.mxu0 0
      %869 = vmatprep.mubr.bf16.mxu0 0
      %870 = vmatmul.mubr.bf16.gmra.mrb[0].mxu0 %v752
      %v871 = vpop.f32.mrb[0].mxu0
      %v872 = vadd.f32 %v811, %v871
      %v873 = vpop.f32.mrb[0].mxu0
      %v874 = vpop.f32.mrb[0].mxu0
      %v875 = vadd.f32 %v811, %v874
      %v876 = vpop.f32.mrb[0].mxu0
      %877 = vdwg.mxu0
      %v878 = vmax.f32 %v872, 0.0
      %v879 = vmax.f32 %v875, 0.0
      %v880 = vand.u32 2147483647, %v872
      %v881 = vand.u32 2147483647, %v875
      %v882 = vsub.f32 0.0, %v880
      %v883 = vsub.f32 0.0, %v881
      %v884 = vmul.f32 %v882, 1.442695
      %v885 = vpow.pop %v884
      %v886 = vmul.f32 %v883, 1.442695
      %v887 = vpow.pop %v886
      %v888 = vadd.f32 %v885, 1.0
      %v889 = vlog2.pop %v888
      %v890 = vmul.f32 %v889, 0.6931472
      %v891 = vmul.f32 -0.5, %v885
      %v892 = vadd.f32 %v891, 1.0
      %v893 = vmul.f32 %v892, %v885
      %v894 = vand.u32 2147483647, %v885
      %vm895 = vcmp.lt.f32.partialorder %v894, 0.0004427343
      %v896 = vsel %vm895, %v893, %v890
      %v897 = vadd.f32 %v887, 1.0
      %v898 = vlog2.pop %v897
      %v899 = vmul.f32 %v898, 0.6931472
      %v900 = vmul.f32 -0.5, %v887
      %v901 = vadd.f32 %v900, 1.0
      %v902 = vmul.f32 %v901, %v887
      %v903 = vand.u32 2147483647, %v887
      %vm904 = vcmp.lt.f32.partialorder %v903, 0.0004427343
      %v905 = vsel %vm904, %v902, %v899
      %v906 = vadd.f32 %v878, %v896
      %v907 = vadd.f32 %v879, %v905
      %vm908 = vcmask 15360
      %909 = vst.msk [vmem:[%s429] sm:$0xff] %vm908, %v906
      %910 = vst.msk [vmem:[%s429 + $0x8] sm:$0xff] %vm908, %v907
      %s911 = smul.u32 2, %s24
      %p912 = scmp.lt.s32.totalorder %s911, 7
      %s913 = scalar_select %p912, %s911, 7
      %s914 = smul.addr %s913, 8
      %s915 = scalar_lea.vmem %s11, %s914
      %s916 = smul.u32 2, %s24
      %p917 = scmp.lt.s32.totalorder %s916, 7
      %s918 = scalar_select %p917, %s916, 7
      %s919 = smul.addr %s918, 8
      %s920 = scalar_lea.vmem %s12, %s919
      // Predicated region
      $region65: #{earthquake_forward.1} parent=63 // pred_check
        %p921 = pneg %p278
      $region66: #{earthquake_forward.1} parent=63 // pred_check_branch
        %923 = sbr.rel (%p921) target = $region68
      $region67: #{earthquake_forward.1} parent=63 // pred_region
        %s924 = smul.u32 2, %s24
      $region68: #{earthquake_forward.1} parent=63 // pred_fallthru
        _
      // Predicated region
      $region69: #{earthquake_forward.1} parent=63 // pred_check
        %p925 = pneg %p304
      $region70: #{earthquake_forward.1} parent=63 // pred_check_branch
        %927 = sbr.rel (%p925) target = $region72
      $region71: #{earthquake_forward.1} parent=63 // pred_region
        %s928 = smul.u32 2, %s24
      $region72: #{earthquake_forward.1} parent=63 // pred_fallthru
        _
    $region64: #{earthquake_forward.1} parent=5 // pred_fallthru
      _
    %p929 = scmp.le.s32.totalorder 2, %s19
    // Predicated region
    $region73: #{earthquake_forward.1} parent=5 // pred_check
      %p930 = pneg %p929
    $region74: #{earthquake_forward.1} parent=5 // pred_check_branch
      %932 = sbr.rel (%p930) target = $region76
    $region75: #{earthquake_forward.1} parent=5 // pred_region
      %s933 = ssub.s32 %s19, 2
      // Predicated region
      $region77: #{earthquake_forward.1} parent=75 // pred_check
        %p934 = pneg %p284
      $region78: #{earthquake_forward.1} parent=75 // pred_check_branch
        %936 = sbr.rel (%p934) target = $region80
      $region79: #{earthquake_forward.1} parent=75 // pred_region
        %s937 = smul.u32 2, %s25
        %p938 = scmp.lt.s32.totalorder %s937, 7
        %s939 = scalar_select %p938, %s937, 7
        %s940 = smul.addr %s939, 8
        %s941 = scalar_lea.vmem %s11, %s940
      $region80: #{earthquake_forward.1} parent=75 // pred_fallthru
        _
      // Predicated region
      $region81: #{earthquake_forward.1} parent=75 // pred_check
        %p942 = pneg %p310
      $region82: #{earthquake_forward.1} parent=75 // pred_check_branch
        %944 = sbr.rel (%p942) target = $region84
      $region83: #{earthquake_forward.1} parent=75 // pred_region
        %s945 = smul.u32 2, %s25
        %p946 = scmp.lt.s32.totalorder %s945, 7
        %s947 = scalar_select %p946, %s945, 7
        %s948 = smul.addr %s947, 8
        %s949 = scalar_lea.vmem %s12, %s948
      $region84: #{earthquake_forward.1} parent=75 // pred_fallthru
        _
    $region76: #{earthquake_forward.1} parent=5 // pred_fallthru
      _
  $region6: #{earthquake_forward.1} parent=0 // loop_footer
    %s23 = sadd.s32 1, %s19
  $region7: #{earthquake_forward.1} parent=0 // loop_footer_branch
    %18 = sbr.rel target = $region3
  $region8: #{earthquake_forward.1} parent=0 // loop_exit
    _

</llo_original>
